<compile_context>
chip_gen: v7x
topology: tpu7x:2x2x1
jax: 0.10.0
libtpu: 0.0.40
codegen_flags: <defaults>
</compile_context>

<pallas_src>
import functools

import jax
import jax.numpy as jnp
import numpy as np
from jax import lax
from jax.experimental import pallas as pl
from jax.experimental.pallas import tpu as pltpu

_MIN_VMEM_LIMIT = 32 << 20        # never request less than a healthy scoped window
_MXU_GATE_THRESHOLD = 4096        # C*Cr above which the excitation goes to the MXU


def _tpu_vmem_bytes():
    """Physical VMEM per TensorCore (v5e/v6e: 128 MiB, v7x: 64 MiB)."""
    try:
        return int(pltpu.get_tpu_info().vmem_capacity_bytes)
    except Exception:
        return 64 << 20           # conservative (v7x-sized) fallback


# ----------------------------------------------------------------------------
# Single-pass kernel: one grid step = `nb` full (C, HW) feature maps.
# 1 HBM read + 1 HBM write per element.
# ----------------------------------------------------------------------------
def _se_single_pass_kernel(x_ref, w1_ref, b1_ref, w2_ref, b2_ref, o_ref, *,
                           inv_hw, nb, use_mxu):
    # Weights/biases are grid-invariant (index_map -> (0, 0)); load once.
    w1 = w1_ref[...]
    b1 = b1_ref[...]
    w2 = w2_ref[...]              # (C, Cr)
    b2 = b2_ref[...]              # (C, 1)

    def body(b, carry):
        # Squeeze: f32-accumulated global average pool.  The cast feeds the
        # lane reduction directly; no (C, HW) f32 slab is kept live.
        pooled = jnp.sum(x_ref[b].astype(jnp.float32), axis=-1,
                         keepdims=True) * inv_hw                       # (C, 1)
        if use_mxu:
            # Excitation as two column-vector matmuls on the otherwise-idle MXU
            # (w1 is (Cr, C), w2 is (C, Cr)); f32 at HIGHEST precision.
            h = jnp.dot(w1, pooled, preferred_element_type=jnp.float32,
                        precision=lax.Precision.HIGHEST) + b1          # (Cr, 1)
            h = h * jax.nn.sigmoid(h)                                  # SiLU
            g = jnp.dot(w2, h, preferred_element_type=jnp.float32,
                        precision=lax.Precision.HIGHEST) + b2          # (C, 1)
        else:
            # Tiny stages: broadcast+reduce on VPU/XLU (w1 passed as (C, Cr)).
            h = jnp.sum(w1 * pooled, axis=0, keepdims=True) + b1       # (1, Cr)
            h = h * jax.nn.sigmoid(h)                                  # SiLU
            g = jnp.sum(w2 * h, axis=-1, keepdims=True) + b2           # (C, 1)
        gate = jax.nn.sigmoid(g).astype(o_ref.dtype)                   # cast once
        # Scale: re-read x and multiply in the I/O dtype (bf16-native scale on
        # v6e/v7x; no per-element f32 upcast).
        o_ref[b] = x_ref[b] * gate
        return carry

    lax.fori_loop(0, nb, body, 0, unroll=True)


# ----------------------------------------------------------------------------
# Two-phase fallback (large C*HW or N==1 on a 2-TC chip):
#   phase 1 = tiled pool + gate, phase 2 = tiled elementwise scale.
# ----------------------------------------------------------------------------
def _se_gate_kernel(x_ref, w1_ref, b1_ref, w2_ref, b2_ref, g_ref, acc_ref, *,
                    inv_hw, use_mxu):
    t = pl.program_id(1)

    @pl.when(t == 0)
    def _():
        acc_ref[...] = jnp.zeros_like(acc_ref)

    # Running f32 spatial sum; the cast feeds the reduction directly.
    acc_ref[...] += jnp.sum(x_ref[0].astype(jnp.float32), axis=-1, keepdims=True)

    @pl.when(t == pl.num_programs(1) - 1)
    def _():
        pooled = acc_ref[...] * inv_hw                                 # (C, 1)
        if use_mxu:
            h = jnp.dot(w1_ref[...], pooled, preferred_element_type=jnp.float32,
                        precision=lax.Precision.HIGHEST) + b1_ref[...]  # (Cr, 1)
            h = h * jax.nn.sigmoid(h)                                  # SiLU
            g = jnp.dot(w2_ref[...], h, preferred_element_type=jnp.float32,
                        precision=lax.Precision.HIGHEST) + b2_ref[...]  # (C, 1)
        else:
            h = jnp.sum(w1_ref[...] * pooled, axis=0, keepdims=True) + b1_ref[...]
            h = h * jax.nn.sigmoid(h)                                  # SiLU
            g = jnp.sum(w2_ref[...] * h, axis=-1, keepdims=True) + b2_ref[...]
        # Gate stored in the I/O dtype so the scale kernel is bf16-native.
        g_ref[0] = jax.nn.sigmoid(g).astype(g_ref.dtype)               # (C, 1)


def _se_scale_kernel(x_ref, g_ref, o_ref):
    # Native-dtype multiply (gate already cast); lane-broadcast of (C, 1) gate.
    o_ref[...] = x_ref[...] * g_ref[...]


def _pick_hw_tile(hw, c, itemsize, target_bytes):
    """Largest lane-dense (multiple-of-128) divisor of hw fitting the target,
    or hw itself when no lane-dense divisor exists (keeps BlockSpecs legal)."""
    if hw % 128:
        # TODO(synk): HW not a multiple of 128 (e.g. 7x7=49) -> rows use <128
        # lanes and stores are masked vst; a channel-folded lane layout would
        # fix it but breaks per-channel pooling, so we accept masked stores.
        return int(hw)
    max_lanes = max(128, target_bytes // max(c * itemsize, 1))
    t = min((max_lanes // 128) * 128, hw)
    while t >= 128:
        if hw % t == 0:
            return int(t)
        t -= 128
    return int(hw)


# ----------------------------------------------------------------------------
# Wrapper
# ----------------------------------------------------------------------------
def se_block(x_nchw, w1, b1, w2, b2, *, max_single_pass_bytes=None, hw_tile=None):
    """x_nchw: (N, C, H, W); w1: (Cr, C); b1: (Cr,); w2: (C, Cr); b2: (C,)."""
    N, C, H, W = x_nchw.shape
    Cr = w1.shape[0]
    HW = H * W
    itemsize = jnp.dtype(x_nchw.dtype).itemsize

    vmem_cap = _tpu_vmem_bytes()
    small_vmem = vmem_cap <= (64 << 20)          # v7x-like: 64 MiB VMEM, 2 TCs
    if max_single_pass_bytes is None:
        max_single_pass_bytes = vmem_cap * 3 // 4

    use_mxu = (C * Cr) >= _MXU_GATE_THRESHOLD

    x2 = x_nchw.reshape(N, C, HW)
    w2f = jnp.asarray(w2, jnp.float32)                       # (C, Cr)
    b2c = jnp.asarray(b2, jnp.float32).reshape(C, 1)
    if use_mxu:
        w1k = jnp.asarray(w1, jnp.float32)                   # (Cr, C) for MXU matvec
        b1k = jnp.asarray(b1, jnp.float32).reshape(Cr, 1)
    else:
        w1k = jnp.transpose(jnp.asarray(w1, jnp.float32))    # (C, Cr) for VPU path
        b1k = jnp.asarray(b1, jnp.float32).reshape(1, Cr)

    per_image = C * HW * itemsize
    inv_hw = np.float32(1.0 / HW)
    weight_bytes = 2 * (2 * C * Cr + Cr + C) * 4             # double-buffered consts

    def single_pass_bytes(nb):
        io = 2 * 2 * nb * per_image                          # in + out, double-buffered
        cast_tmp = C * HW * 4 if itemsize < 4 else 0         # transient f32 pool view
        return io + cast_tmp + weight_bytes + (1 << 20)

    flops = int(2 * N * C * HW + 4 * N * C * Cr)
    transcend = int(N * (2 * Cr + 2 * C))
    io_bytes = int(2 * N * per_image + (2 * C * Cr + Cr + C) * 4)

    # On a 2-TC chip a single-image single-pass grid would idle one core;
    # prefer the two-phase path there when the image tiles cleanly.
    force_two_phase = (small_vmem and N == 1 and per_image >= (4 << 20)
                       and HW % 128 == 0 and HW >= 256)

    if not force_two_phase and single_pass_bytes(1) <= max_single_pass_bytes:
        # ---------------- single-pass: 1 HBM read + 1 HBM write ----------------
        target_block = (6 << 20) if small_vmem else (16 << 20)
        nb = max(1, min(8, target_block // max(per_image, 1), N))
        if small_vmem and N >= 2:
            nb = min(nb, max(1, N // 2))     # keep >=2 grid steps for the 2 TCs
        while N % nb or single_pass_bytes(nb) > max_single_pass_bytes:
            nb -= 1
        vmem_limit = int(min(vmem_cap, max(_MIN_VMEM_LIMIT, single_pass_bytes(nb))))

        kernel = functools.partial(_se_single_pass_kernel, inv_hw=inv_hw, nb=nb,
                                   use_mxu=use_mxu)
        out = pl.pallas_call(
            kernel,
            out_shape=jax.ShapeDtypeStruct((N, C, HW), x_nchw.dtype),
            grid_spec=pltpu.PrefetchScalarGridSpec(
                num_scalar_prefetch=0,
                grid=(N // nb,),
                in_specs=[
                    pl.BlockSpec((nb, C, HW), lambda n: (n, 0, 0)),
                    pl.BlockSpec(w1k.shape, lambda n: (0, 0)),   # grid-invariant
                    pl.BlockSpec(b1k.shape, lambda n: (0, 0)),
                    pl.BlockSpec(w2f.shape, lambda n: (0, 0)),
                    pl.BlockSpec(b2c.shape, lambda n: (0, 0)),
                ],
                out_specs=pl.BlockSpec((nb, C, HW), lambda n: (n, 0, 0)),
            ),
            compiler_params=pltpu.CompilerParams(
                dimension_semantics=("parallel",),
                vmem_limit_bytes=vmem_limit,
            ),
            cost_estimate=pl.CostEstimate(flops=flops, transcendentals=transcend,
                                          bytes_accessed=io_bytes),
        )(x2, w1k, b1k, w2f, b2c)
        return out.reshape(N, C, H, W)

    # ---------------- two-phase: pool + gate, then tiled elementwise scale -----
    if hw_tile is None:
        hw_tile = _pick_hw_tile(HW, C, itemsize,
                                target_bytes=(4 << 20) if small_vmem else (8 << 20))
    assert HW % hw_tile == 0, "hw_tile must divide H*W"
    assert hw_tile == HW or hw_tile % 128 == 0, "hw_tile must be lane-dense or full"
    n_tiles = HW // hw_tile

    gate_vmem = int(min(vmem_cap, max(
        _MIN_VMEM_LIMIT,
        2 * C * hw_tile * itemsize + (C * hw_tile * 4 if itemsize < 4 else 0)
        + weight_bytes + C * 4 + (1 << 20))))
    gates = pl.pallas_call(
        functools.partial(_se_gate_kernel, inv_hw=inv_hw, use_mxu=use_mxu),
        out_shape=jax.ShapeDtypeStruct((N, C, 1), x_nchw.dtype),
        grid_spec=pltpu.PrefetchScalarGridSpec(
            num_scalar_prefetch=0,
            grid=(N, n_tiles),
            in_specs=[
                pl.BlockSpec((1, C, hw_tile), lambda n, t: (n, 0, t)),
                pl.BlockSpec(w1k.shape, lambda n, t: (0, 0)),
                pl.BlockSpec(b1k.shape, lambda n, t: (0, 0)),
                pl.BlockSpec(w2f.shape, lambda n, t: (0, 0)),
                pl.BlockSpec(b2c.shape, lambda n, t: (0, 0)),
            ],
            out_specs=pl.BlockSpec((1, C, 1), lambda n, t: (n, 0, 0)),
            scratch_shapes=[pltpu.VMEM((C, 1), jnp.float32)],
        ),
        compiler_params=pltpu.CompilerParams(
            dimension_semantics=("parallel", "arbitrary"),
            vmem_limit_bytes=gate_vmem,
        ),
        cost_estimate=pl.CostEstimate(
            flops=int(N * C * HW + 4 * N * C * Cr),
            transcendentals=transcend,
            bytes_accessed=int(N * per_image + (2 * C * Cr + Cr + C) * 4)),
    )(x2, w1k, b1k, w2f, b2c)

    scale_vmem = int(min(vmem_cap, max(
        _MIN_VMEM_LIMIT,
        2 * 2 * C * hw_tile * itemsize + 2 * C * itemsize + (1 << 20))))
    out = pl.pallas_call(
        _se_scale_kernel,
        out_shape=jax.ShapeDtypeStruct((N, C, HW), x_nchw.dtype),
        grid_spec=pltpu.PrefetchScalarGridSpec(
            num_scalar_prefetch=0,
            grid=(N, n_tiles),
            in_specs=[
                pl.BlockSpec((1, C, hw_tile), lambda n, t: (n, 0, t)),
                pl.BlockSpec((1, C, 1), lambda n, t: (n, 0, 0)),
            ],
            out_specs=pl.BlockSpec((1, C, hw_tile), lambda n, t: (n, 0, t)),
        ),
        compiler_params=pltpu.CompilerParams(
            dimension_semantics=("parallel", "parallel"),  # both v7x TCs busy at N=1
            vmem_limit_bytes=scale_vmem,
        ),
        cost_estimate=pl.CostEstimate(
            flops=int(N * C * HW), transcendentals=0,
            bytes_accessed=int(2 * N * per_image)),
    )(x2, gates)
    return out.reshape(N, C, H, W)


def se_block_ref(x, w1, b1, w2, b2):
    """Pure-JAX reference mirroring the PyTorch forward."""
    pooled = jnp.mean(x, axis=(2, 3), keepdims=True)                    # (N,C,1,1)
    h = jnp.einsum("oc,ncij->noij", w1, pooled) + b1[None, :, None, None]
    h = h * jax.nn.sigmoid(h)                                           # SiLU
    g = jnp.einsum("oc,ncij->noij", w2, h) + b2[None, :, None, None]
    g = jax.nn.sigmoid(g)
    return x * g


if __name__ == "__main__":
    key = jax.random.PRNGKey(0)

    def make_params(k, C, r):
        Cr = max(C // r, 1)
        k1, k2, k3, k4 = jax.random.split(k, 4)
        bnd1 = 1.0 / np.sqrt(C)
        w1 = jax.random.uniform(k1, (Cr, C), jnp.float32, -bnd1, bnd1)
        b1 = jax.random.uniform(k2, (Cr,), jnp.float32, -bnd1, bnd1)
        bnd2 = 1.0 / np.sqrt(Cr)
        w2 = jax.random.uniform(k3, (C, Cr), jnp.float32, -bnd2, bnd2)
        b2 = jax.random.uniform(k4, (C,), jnp.float32, -bnd2, bnd2)
        return w1, b1, w2, b2

    # ---- test 1: f32, single-pass path, small C (VPU excitation) ----
    N, C, H, W, r = 2, 4, 16, 16, 2
    kx, kp, key = jax.random.split(key, 3)
    x = jax.random.normal(kx, (N, C, H, W), jnp.float32)
    p = make_params(kp, C, r)
    out = jax.block_until_ready(se_block(x, *p))
    ref = se_block_ref(x, *p)
    assert out.shape == x.shape and out.dtype == x.dtype
    assert jnp.allclose(out, ref, atol=1e-5, rtol=1e-5), "single-pass f32 mismatch"

    # ---- test 2: forced two-phase path (tiled pooling + tiled scale) ----
    N2, C2, H2, W2, r2 = 2, 8, 32, 32, 2
    kx2, kp2, key = jax.random.split(key, 3)
    xb = jax.random.normal(kx2, (N2, C2, H2, W2), jnp.float32)
    p2 = make_params(kp2, C2, r2)
    out2 = jax.block_until_ready(
        se_block(xb, *p2, max_single_pass_bytes=0, hw_tile=128))
    ref2 = se_block_ref(xb, *p2)
    assert jnp.allclose(out2, ref2, atol=1e-5, rtol=1e-5), "two-phase mismatch"

    # ---- test 3: bf16 I/O, f32 gate math, bf16-native scale ----
    xh = x.astype(jnp.bfloat16)
    out3 = jax.block_until_ready(se_block(xh, *p))
    ref3 = se_block_ref(xh.astype(jnp.float32), *p)
    assert out3.dtype == jnp.bfloat16
    assert jnp.allclose(out3.astype(jnp.float32), ref3, atol=5e-2, rtol=5e-2), \
        "bf16 mismatch"

    # ---- test 4: f32, single-pass path, large C (MXU excitation) ----
    N4, C4, H4, W4, r4 = 2, 256, 8, 8, 16
    kx4, kp4, key = jax.random.split(key, 3)
    x4 = jax.random.normal(kx4, (N4, C4, H4, W4), jnp.float32)
    p4 = make_params(kp4, C4, r4)
    out4 = jax.block_until_ready(se_block(x4, *p4))
    ref4 = se_block_ref(x4, *p4)
    assert jnp.allclose(out4, ref4, atol=5e-3, rtol=5e-3), "single-pass MXU mismatch"

    # ---- test 5: forced two-phase, large C (MXU gate), N=1 ----
    x5 = jax.random.normal(jax.random.PRNGKey(5), (1, 256, 16, 16), jnp.float32)
    out5 = jax.block_until_ready(
        se_block(x5, *p4, max_single_pass_bytes=0, hw_tile=128))
    ref5 = se_block_ref(x5, *p4)
    assert jnp.allclose(out5, ref5, atol=5e-3, rtol=5e-3), "two-phase MXU mismatch"

    print("KERNEL_OK")
</pallas_src>

<mosaic_0001>
module attributes {stable_mosaic.version = 11 : i64} {
  func.func @_se_single_pass_kernel(%arg0: i32, %arg1: memref<1x4x256xf32, #tpu.memory_space<vmem>>, %arg2: memref<4x2xf32, #tpu.memory_space<vmem>>, %arg3: memref<1x2xf32, #tpu.memory_space<vmem>>, %arg4: memref<4x2xf32, #tpu.memory_space<vmem>>, %arg5: memref<4x1xf32, #tpu.memory_space<vmem>>, %arg6: memref<1x4x256xf32, #tpu.memory_space<vmem>>) attributes {dimension_semantics = [#tpu.dimension_semantics<parallel>], iteration_bounds = array<i64: 2>, scalar_prefetch = 0 : i64, scratch_operands = 0 : i64, tpu.core_type = #tpu.core_type<tc>, window_params = [{transform_indices = @transform_0, window_bounds = array<i64: 1, 4, 256>}, {pipeline_mode = #tpu.pipeline_mode<synchronous>, transform_indices = @transform_1, window_bounds = array<i64: 4, 2>}, {pipeline_mode = #tpu.pipeline_mode<synchronous>, transform_indices = @transform_2, window_bounds = array<i64: 1, 2>}, {pipeline_mode = #tpu.pipeline_mode<synchronous>, transform_indices = @transform_3, window_bounds = array<i64: 4, 2>}, {pipeline_mode = #tpu.pipeline_mode<synchronous>, transform_indices = @transform_4, window_bounds = array<i64: 4, 1>}, {transform_indices = @transform_5, window_bounds = array<i64: 1, 4, 256>}]} {
    %c0 = arith.constant 0 : index
    %c0_0 = arith.constant 0 : index
    %0 = vector.load %arg2[%c0, %c0_0] : memref<4x2xf32, #tpu.memory_space<vmem>>, vector<4x2xf32>
    %c0_1 = arith.constant 0 : index
    %c0_2 = arith.constant 0 : index
    %1 = vector.load %arg3[%c0_1, %c0_2] : memref<1x2xf32, #tpu.memory_space<vmem>>, vector<1x2xf32>
    %c0_3 = arith.constant 0 : index
    %c0_4 = arith.constant 0 : index
    %2 = vector.load %arg4[%c0_3, %c0_4] : memref<4x2xf32, #tpu.memory_space<vmem>>, vector<4x2xf32>
    %c0_5 = arith.constant 0 : index
    %c0_6 = arith.constant 0 : index
    %3 = vector.load %arg5[%c0_5, %c0_6] : memref<4x1xf32, #tpu.memory_space<vmem>>, vector<4x1xf32>
    %c0_i32 = arith.constant 0 : i32
    %4 = arith.index_cast %c0_i32 : i32 to index
    %c0_7 = arith.constant 0 : index
    %c0_8 = arith.constant 0 : index
    %5 = vector.load %arg1[%4, %c0_7, %c0_8] : memref<1x4x256xf32, #tpu.memory_space<vmem>>, vector<1x4x256xf32>
    %6 = vector.shape_cast %5 : vector<1x4x256xf32> to vector<4x256xf32>
    %cst = arith.constant dense<0.000000e+00> : vector<4xf32>
    %7 = vector.multi_reduction <add>, %6, %cst [1] : vector<4x256xf32> to vector<4xf32>
    %8 = vector.shape_cast %7 : vector<4xf32> to vector<4x1xf32>
    %cst_9 = arith.constant 3.906250e-03 : f32
    %9 = vector.broadcast %cst_9 : f32 to vector<4x1xf32>
    %10 = arith.mulf %8, %9 : vector<4x1xf32>
    %11 = vector.broadcast %10 : vector<4x1xf32> to vector<4x2xf32>
    %12 = arith.mulf %0, %11 : vector<4x2xf32>
    %cst_10 = arith.constant dense<0.000000e+00> : vector<2xf32>
    %13 = vector.multi_reduction <add>, %12, %cst_10 [0] : vector<4x2xf32> to vector<2xf32>
    %14 = vector.shape_cast %13 : vector<2xf32> to vector<1x2xf32>
    %15 = arith.addf %14, %1 : vector<1x2xf32>
    %16 = arith.negf %15 : vector<1x2xf32>
    %17 = math.exp %16 : vector<1x2xf32>
    %cst_11 = arith.constant 1.000000e+00 : f32
    %18 = vector.broadcast %cst_11 : f32 to vector<1x2xf32>
    %19 = arith.addf %18, %17 : vector<1x2xf32>
    %20 = arith.divf %18, %19 : vector<1x2xf32>
    %21 = arith.mulf %15, %20 : vector<1x2xf32>
    %22 = vector.broadcast %21 : vector<1x2xf32> to vector<4x2xf32>
    %23 = arith.mulf %2, %22 : vector<4x2xf32>
    %cst_12 = arith.constant dense<0.000000e+00> : vector<4xf32>
    %24 = vector.multi_reduction <add>, %23, %cst_12 [1] : vector<4x2xf32> to vector<4xf32>
    %25 = vector.shape_cast %24 : vector<4xf32> to vector<4x1xf32>
    %26 = arith.addf %25, %3 : vector<4x1xf32>
    %27 = arith.negf %26 : vector<4x1xf32>
    %28 = math.exp %27 : vector<4x1xf32>
    %cst_13 = arith.constant 1.000000e+00 : f32
    %29 = vector.broadcast %cst_13 : f32 to vector<4x1xf32>
    %30 = arith.addf %29, %28 : vector<4x1xf32>
    %31 = arith.divf %29, %30 : vector<4x1xf32>
    %32 = arith.index_cast %c0_i32 : i32 to index
    %c0_14 = arith.constant 0 : index
    %c0_15 = arith.constant 0 : index
    %33 = vector.load %arg1[%32, %c0_14, %c0_15] : memref<1x4x256xf32, #tpu.memory_space<vmem>>, vector<1x4x256xf32>
    %34 = vector.shape_cast %33 : vector<1x4x256xf32> to vector<4x256xf32>
    %35 = vector.broadcast %31 : vector<4x1xf32> to vector<4x256xf32>
    %36 = arith.mulf %34, %35 : vector<4x256xf32>
    %37 = arith.index_cast %c0_i32 : i32 to index
    %c0_16 = arith.constant 0 : index
    %c0_17 = arith.constant 0 : index
    %38 = vector.load %arg6[%37, %c0_16, %c0_17] : memref<1x4x256xf32, #tpu.memory_space<vmem>>, vector<1x4x256xf32>
    %39 = vector.shape_cast %38 : vector<1x4x256xf32> to vector<4x256xf32>
    %40 = vector.shape_cast %36 : vector<4x256xf32> to vector<1x4x256xf32>
    tpu.vector_store %arg6[%37, %c0_16, %c0_17], %40 {strides = array<i32>} : memref<1x4x256xf32, #tpu.memory_space<vmem>>, vector<1x4x256xf32>,
    %c1_i32 = arith.constant 1 : i32
    return
  }
  func.func @transform_0(%arg0: i32) -> (i32, i32, i32) {
    %c0_i32 = arith.constant 0 : i32
    %c0_i32_0 = arith.constant 0 : i32
    %c0_i32_1 = arith.constant 0 : i32
    return %arg0, %c0_i32, %c0_i32_0 : i32, i32, i32
  }
  func.func @transform_1(%arg0: i32) -> (i32, i32) {
    %c0_i32 = arith.constant 0 : i32
    %c0_i32_0 = arith.constant 0 : i32
    %c0_i32_1 = arith.constant 0 : i32
    return %c0_i32, %c0_i32_0 : i32, i32
  }
  func.func @transform_2(%arg0: i32) -> (i32, i32) {
    %c0_i32 = arith.constant 0 : i32
    %c0_i32_0 = arith.constant 0 : i32
    %c0_i32_1 = arith.constant 0 : i32
    return %c0_i32, %c0_i32_0 : i32, i32
  }
  func.func @transform_3(%arg0: i32) -> (i32, i32) {
    %c0_i32 = arith.constant 0 : i32
    %c0_i32_0 = arith.constant 0 : i32
    %c0_i32_1 = arith.constant 0 : i32
    return %c0_i32, %c0_i32_0 : i32, i32
  }
  func.func @transform_4(%arg0: i32) -> (i32, i32) {
    %c0_i32 = arith.constant 0 : i32
    %c0_i32_0 = arith.constant 0 : i32
    %c0_i32_1 = arith.constant 0 : i32
    return %c0_i32, %c0_i32_0 : i32, i32
  }
  func.func @transform_5(%arg0: i32) -> (i32, i32, i32) {
    %c0_i32 = arith.constant 0 : i32
    %c0_i32_0 = arith.constant 0 : i32
    %c0_i32_1 = arith.constant 0 : i32
    return %arg0, %c0_i32, %c0_i32_0 : i32, i32, i32
  }
}

</mosaic_0001>

<llo_original>
// kernel: tpu_custom_call.1
$region0: #{tpu_custom_call.1}
  #allocation0 [shape = 'u32[]', space=smem, size = 0x4, offset = 0x4, fixed_abs, tag = 'smem constant byte address 0x4 - core index']
  #allocation1 [shape = 'u32[144,128]{1,0:T(1,128)}', space=vmem, size = 0x12000, scoped, tag = 'internal scratch']
  %s0 = inlined_call_operand.vmem [shape: f32[2,4,256], index: 0, kind: input, shape index: {}]
  %s1 = inlined_call_operand.vmem [shape: f32[4,2], index: 1, kind: input, shape index: {}]
  %s2 = inlined_call_operand.vmem [shape: f32[1,2], index: 2, kind: input, shape index: {}]
  %s3 = inlined_call_operand.vmem [shape: f32[4,2], index: 3, kind: input, shape index: {}]
  %s4 = inlined_call_operand.vmem [shape: f32[4,1], index: 4, kind: input, shape index: {}]
  %s5 = inlined_call_operand.hbm [shape: f32[2,4,256], index: 5, kind: output, shape index: {}]
  %s6 = sld [smem:[#allocation0]]
  $region53: #{tpu_custom_call.1} parent=0
    _
  %s8 = ssub.s32 1, %s6
  %s9 = scalar_select 0, %s8, %s6
  $region1: #{tpu_custom_call.1} parent=0
    #allocation2 [shape = 'u8[8192]{0}', space=vmem, size = 0x2000, scoped, tag = 'output window, operand 0']
    #allocation3 [shape = 's32[2]{0}', space=sflag, size = 0x8, scoped, tag = 'scoped memory for tpu_custom_call.1']
    %10 = vsyncpa [#allocation3], 0
    %s11 = scalar_lea.sflag [#allocation3], 1
    %12 = vsyncpa %s11, 0
    loop: start=0, step=1, limit=4
    $region2: #{tpu_custom_call.1} parent=1 // loop_pre_header
      _
    $region3: #{tpu_custom_call.1} parent=1 // loop_header
      %s14 = sphi 0, %s18
      %p15 = scmp.ge.s32.totalorder %s14, 4
      %s24 = sphi 0, %s26
      %s27 = sphi 0, %s24
      %s28 = sphi 0, %s27
      %s44 = sphi 0, %s28
      %s48 = sphi 0, %s48
      %s50 = sphi 0, %s48
      %s51 = sphi 0, %s50
      %s65 = sphi 0, %s51
      %s69 = sphi 0, %s69
      %s71 = sphi 0, %s69
      %s72 = sphi 0, %s71
      %s86 = sphi 0, %s72
      %s90 = sphi 0, %s90
      %s92 = sphi 0, %s90
      %s93 = sphi 0, %s92
      %s107 = sphi 0, %s93
      %s111 = sphi 0, %s111
      %s113 = sphi 0, %s111
      %s114 = sphi 0, %s113
      %s128 = sphi 0, %s114
      %s134 = sphi 0, %s136
      %s137 = sphi 0, %s134
      %s138 = sphi 0, %s137
      %s154 = sphi 0, %s138
    $region4: #{tpu_custom_call.1} parent=1 // loop_header_branch
      %17 = sbr.rel (%p15) target = $region8
    $region5: #{tpu_custom_call.1} parent=1 // loop_body
      %s19 = ssub.s32 %s14, 1
      %s20 = ssub.s32 %s14, 2
      %s21 = sadd.s32 %s14, 1
      %s22 = ssub.s32 %s14, %s21
      %p23 = scmp.eq.s32.totalorder %s22, 0
      %s25 = sadd.s32 %s24, 1
      %s26 = scalar_select %p23, %s24, %s25
      %p29 = pneg %p23
      %p30 = scmp.eq.s32.totalorder %s14, 1
      %p31 = por %p29, %p30
      %p32 = scmp.ne.s32.totalorder %s24, %s27
      %p33 = scmp.eq.s32.totalorder %s14, 0
      %p34 = por %p32, %p33
      %p35 = scmp.ne.s32.totalorder %s24, %s27
      %p36 = scmp.eq.s32.totalorder %s19, 1
      %p37 = por %p35, %p36
      %p38 = scmp.ne.s32.totalorder %s27, %s28
      %p39 = scmp.eq.s32.totalorder %s19, 0
      %p40 = por %p38, %p39
      %p41 = scmp.ne.s32.totalorder %s27, %s28
      %p42 = scmp.eq.s32.totalorder %s20, 1
      %p43 = por %p41, %p42
      %p45 = scmp.ne.s32.totalorder %s28, %s44
      %p46 = scmp.eq.s32.totalorder %s20, 0
      %p47 = por %p45, %p46
      %s49 = sadd.s32 %s48, 1
      %p52 = scmp.eq.s32.totalorder %s14, 1
      %p53 = scmp.ne.s32.totalorder %s48, %s50
      %p54 = scmp.eq.s32.totalorder %s14, 0
      %p55 = por %p53, %p54
      %p56 = scmp.ne.s32.totalorder %s48, %s50
      %p57 = scmp.eq.s32.totalorder %s19, 1
      %p58 = por %p56, %p57
      %p59 = scmp.ne.s32.totalorder %s50, %s51
      %p60 = scmp.eq.s32.totalorder %s19, 0
      %p61 = por %p59, %p60
      %p62 = scmp.ne.s32.totalorder %s50, %s51
      %p63 = scmp.eq.s32.totalorder %s20, 1
      %p64 = por %p62, %p63
      %p66 = scmp.ne.s32.totalorder %s51, %s65
      %p67 = scmp.eq.s32.totalorder %s20, 0
      %p68 = por %p66, %p67
      %s70 = sadd.s32 %s69, 1
      %p73 = scmp.eq.s32.totalorder %s14, 1
      %p74 = scmp.ne.s32.totalorder %s69, %s71
      %p75 = scmp.eq.s32.totalorder %s14, 0
      %p76 = por %p74, %p75
      %p77 = scmp.ne.s32.totalorder %s69, %s71
      %p78 = scmp.eq.s32.totalorder %s19, 1
      %p79 = por %p77, %p78
      %p80 = scmp.ne.s32.totalorder %s71, %s72
      %p81 = scmp.eq.s32.totalorder %s19, 0
      %p82 = por %p80, %p81
      %p83 = scmp.ne.s32.totalorder %s71, %s72
      %p84 = scmp.eq.s32.totalorder %s20, 1
      %p85 = por %p83, %p84
      %p87 = scmp.ne.s32.totalorder %s72, %s86
      %p88 = scmp.eq.s32.totalorder %s20, 0
      %p89 = por %p87, %p88
      %s91 = sadd.s32 %s90, 1
      %p94 = scmp.eq.s32.totalorder %s14, 1
      %p95 = scmp.ne.s32.totalorder %s90, %s92
      %p96 = scmp.eq.s32.totalorder %s14, 0
      %p97 = por %p95, %p96
      %p98 = scmp.ne.s32.totalorder %s90, %s92
      %p99 = scmp.eq.s32.totalorder %s19, 1
      %p100 = por %p98, %p99
      %p101 = scmp.ne.s32.totalorder %s92, %s93
      %p102 = scmp.eq.s32.totalorder %s19, 0
      %p103 = por %p101, %p102
      %p104 = scmp.ne.s32.totalorder %s92, %s93
      %p105 = scmp.eq.s32.totalorder %s20, 1
      %p106 = por %p104, %p105
      %p108 = scmp.ne.s32.totalorder %s93, %s107
      %p109 = scmp.eq.s32.totalorder %s20, 0
      %p110 = por %p108, %p109
      %s112 = sadd.s32 %s111, 1
      %p115 = scmp.eq.s32.totalorder %s14, 1
      %p116 = scmp.ne.s32.totalorder %s111, %s113
      %p117 = scmp.eq.s32.totalorder %s14, 0
      %p118 = por %p116, %p117
      %p119 = scmp.ne.s32.totalorder %s111, %s113
      %p120 = scmp.eq.s32.totalorder %s19, 1
      %p121 = por %p119, %p120
      %p122 = scmp.ne.s32.totalorder %s113, %s114
      %p123 = scmp.eq.s32.totalorder %s19, 0
      %p124 = por %p122, %p123
      %p125 = scmp.ne.s32.totalorder %s113, %s114
      %p126 = scmp.eq.s32.totalorder %s20, 1
      %p127 = por %p125, %p126
      %p129 = scmp.ne.s32.totalorder %s114, %s128
      %p130 = scmp.eq.s32.totalorder %s20, 0
      %p131 = por %p129, %p130
      %s132 = ssub.s32 %s14, %s21
      %p133 = scmp.eq.s32.totalorder %s132, 0
      %s135 = sadd.s32 %s134, 1
      %s136 = scalar_select %p133, %s134, %s135
      %p139 = pneg %p133
      %p140 = scmp.eq.s32.totalorder %s14, 1
      %p141 = por %p139, %p140
      %p142 = scmp.ne.s32.totalorder %s134, %s137
      %p143 = scmp.eq.s32.totalorder %s14, 0
      %p144 = por %p142, %p143
      %p145 = scmp.ne.s32.totalorder %s134, %s137
      %p146 = scmp.eq.s32.totalorder %s19, 1
      %p147 = por %p145, %p146
      %p148 = scmp.ne.s32.totalorder %s137, %s138
      %p149 = scmp.eq.s32.totalorder %s19, 0
      %p150 = por %p148, %p149
      %p151 = scmp.ne.s32.totalorder %s137, %s138
      %p152 = scmp.eq.s32.totalorder %s20, 1
      %p153 = por %p151, %p152
      %p155 = scmp.ne.s32.totalorder %s138, %s154
      %p156 = scmp.eq.s32.totalorder %s20, 0
      %p157 = por %p155, %p156
      %p158 = scmp.le.s32.totalorder 1, %s14
      %p159 = scmp.lt.s32.totalorder %s14, 3
      %p160 = pnand %p158, %p159
      %p161 = pneg %p160
      // Predicated region
      $region9: #{tpu_custom_call.1} parent=5 // pred_check
        _
      $region10: #{tpu_custom_call.1} parent=5 // pred_check_branch
        %163 = sbr.rel (%p160) target = $region12
      $region11: #{tpu_custom_call.1} parent=5 // pred_region
        %s164 = ssub.s32 %s14, 1
        // Predicated region
        $region13: #{tpu_custom_call.1} parent=11 // pred_check
          %p165 = pneg %p61
        $region14: #{tpu_custom_call.1} parent=11 // pred_check_branch
          %167 = sbr.rel (%p165) target = $region16
        $region15: #{tpu_custom_call.1} parent=11 // pred_region
          _
        $region16: #{tpu_custom_call.1} parent=11 // pred_fallthru
          _
        // Predicated region
        $region17: #{tpu_custom_call.1} parent=11 // pred_check
          %p168 = pneg %p82
        $region18: #{tpu_custom_call.1} parent=11 // pred_check_branch
          %170 = sbr.rel (%p168) target = $region20
        $region19: #{tpu_custom_call.1} parent=11 // pred_region
          _
        $region20: #{tpu_custom_call.1} parent=11 // pred_fallthru
          _
        // Predicated region
        $region21: #{tpu_custom_call.1} parent=11 // pred_check
          %p171 = pneg %p103
        $region22: #{tpu_custom_call.1} parent=11 // pred_check_branch
          %173 = sbr.rel (%p171) target = $region24
        $region23: #{tpu_custom_call.1} parent=11 // pred_region
          _
        $region24: #{tpu_custom_call.1} parent=11 // pred_fallthru
          _
        // Predicated region
        $region25: #{tpu_custom_call.1} parent=11 // pred_check
          %p174 = pneg %p124
        $region26: #{tpu_custom_call.1} parent=11 // pred_check_branch
          %176 = sbr.rel (%p174) target = $region28
        $region27: #{tpu_custom_call.1} parent=11 // pred_region
          _
        $region28: #{tpu_custom_call.1} parent=11 // pred_fallthru
          _
      $region12: #{tpu_custom_call.1} parent=5 // pred_fallthru
        _
      %p177 = scmp.lt.s32.totalorder %s14, 2
      // Predicated region
      $region29: #{tpu_custom_call.1} parent=5 // pred_check
        %p178 = pneg %p177
      $region30: #{tpu_custom_call.1} parent=5 // pred_check_branch
        %180 = sbr.rel (%p178) target = $region32
      $region31: #{tpu_custom_call.1} parent=5 // pred_region
        // Predicated region
        $region33: #{tpu_custom_call.1} parent=31 // pred_check
          %p181 = pneg %p34
        $region34: #{tpu_custom_call.1} parent=31 // pred_check_branch
          %183 = sbr.rel (%p181) target = $region36
        $region35: #{tpu_custom_call.1} parent=31 // pred_region
          %p184 = scmp.lt.s32.totalorder %s14, 1
          %s185 = scalar_select %p184, %s14, 1
          %s186 = smul.addr %s185, 2
          %s187 = smul.addr %s186, 4
          %s188 = scalar_lea.vmem %s0, %s187
        $region36: #{tpu_custom_call.1} parent=31 // pred_fallthru
          _
      $region32: #{tpu_custom_call.1} parent=5 // pred_fallthru
        _
      %p189 = scmp.le.s32.totalorder 1, %s14
      %p190 = scmp.lt.s32.totalorder %s14, 3
      %p191 = pnand %p189, %p190
      %p192 = pneg %p191
      // Predicated region
      $region37: #{tpu_custom_call.1} parent=5 // pred_check
        _
      $region38: #{tpu_custom_call.1} parent=5 // pred_check_branch
        %194 = sbr.rel (%p191) target = $region40
      $region39: #{tpu_custom_call.1} parent=5 // pred_region
        %s195 = ssub.s32 %s14, 1
        %p196 = scmp.lt.s32.totalorder %s19, 1
        %s197 = scalar_select %p196, %s19, 1
        %s198 = smul.addr %s197, 2
        %s199 = smul.addr %s198, 4
        %s200 = scalar_lea.vmem %s0, %s199
        %p201 = pneg %p40
        %p202 = pneg %p37
        %p203 = pneg %p61
        %p204 = pneg %p58
        %p205 = pneg %p82
        %p206 = pneg %p79
        %p207 = pneg %p103
        %p208 = pneg %p100
        %p209 = pneg %p124
        %p210 = pneg %p121
        %p211 = pneg %p150
        %p212 = pneg %p147
        %s213 = sand.u32 %s137, 1
        %s214 = scalar_lea.sflag [#allocation3], %s213
        %s215 = sand.u32 %s137, 1
        %s216 = smul.addr %s215, 8
        %s217 = scalar_lea.vmem [#allocation2], %s216
        %p218 = scmp.lt.s32.totalorder %s19, 1
        %s219 = scalar_select %p218, %s19, 1
        %s220 = smul.addr %s219, 2
        %s221 = smul.addr %s220, 4
        %s222 = scalar_lea.vmem %s0, %s221
        %v223 = vld [vmem:[%s1] sm:$0xf]
        %v224 = vld [vmem:[%s2] sm:$0x1]
        %v225 = vld [vmem:[%s3] sm:$0xf]
        %v226 = vld [vmem:[%s4] sm:$0xf]
        %v227 = vld [vmem:[%s222] sm:$0xff]
        %v229 = vcombine.high %v227, %v227
        %vm231 = vcmask 1043456
        %v232 = vsel %vm231, %v227, 0.0
        %v233 = vsel %vm231, %v229, 0.0
        %v234 = vadd.f32 %v232, %v233
        %235 = vadd.xlane.f32.xlu0 %v234
        %v236 = vpop.xlane.xlu0 %235
        %v237 = vmul.f32 %v236, 0.00390625
        %v238 = vmul.f32 %v223, %v237
        %vm239 = vcmask 11264
        %v240 = vsel %vm239, %v238, 0.0
        %v241 = vrot.slane %v240, 4
        %v242 = vadd.f32 %v240, %v241
        %v243 = vrot.slane %v242, 2
        %v244 = vadd.f32 %v242, %v243
        %v245 = vrot.slane %v244, 1
        %v246 = vadd.f32 %v244, %v245
        %v247 = vadd.f32 %v246, %v224
        %v248 = vxor.u32 %v247, 2147483648
        %v249 = vmul.f32 %v248, 1.442695
        %v250 = vpow.pop %v249
        %v251 = vadd.f32 %v250, 1.0
        %v252 = vrcp.pop %v251
        %v253 = vmul.f32 1.0, %v252
        %v254 = vmul.f32 %v247, %v253
        %v255 = vlaneseq
        %v256 = vshrl.u32 %v255, 7
        %v257 = vsub.s32 0, %v256
        %v258 = vrot.slane %v254, %v257
        %v259 = vmul.f32 %v225, %v258
        %v260 = vsel %vm239, %v259, 0.0
        %261 = vadd.xlane.f32.xlu0 %v260
        %v262 = vpop.xlane.xlu0 %261
        %v263 = vadd.f32 %v262, %v226
        %v264 = vxor.u32 %v263, 2147483648
        %v265 = vmul.f32 %v264, 1.442695
        %v266 = vpow.pop %v265
        %v267 = vadd.f32 %v266, 1.0
        %v268 = vrcp.pop %v267
        %v269 = vmul.f32 1.0, %v268
        %271 = vset.pattern.permute.xlu0 0
        %272 = vperm.xlu0 %271, %v269
        %v273 = vpop.permute.xlu0 %272
        %v275 = vunpack.c.l.s4 839922192
        %v276 = vunpack.c.0.s8 %v275
        %v277 = vlaneseq
        %v278 = vshrl.u32 %v277, 7
        %v279 = vsub.s32 %v276, %v278
        %v280 = vrot.slane %v273, %v279
        %v282 = vmul.f32 %v227, %v280
        %283 = vst [vmem:[%s217] sm:$0xff] %v282
        %s284 = sand.u32 %s137, 1
        %s285 = scalar_lea.sflag [#allocation3], %s284
        %s286 = sand.u32 %s137, 1
        %s287 = smul.addr %s286, 8
        %s288 = scalar_lea.vmem [#allocation2], %s287
        // Predicated region
        $region41: #{tpu_custom_call.1} parent=39 // pred_check
          %p289 = pneg %p147
        $region42: #{tpu_custom_call.1} parent=39 // pred_check_branch
          %291 = sbr.rel (%p289) target = $region44
        $region43: #{tpu_custom_call.1} parent=39 // pred_region
          %s293 = ssub.s32 128, 128
          %294 = vsyncadd %s285, %s293
          %s295 = smul.addr %s19, 2
          %s296 = smul.addr %s295, 64
          %s297 = scalar_lea.hbm %s5, %s296
          %s299 = sshll.u32 %s288, 4
          %s300 = int_to_ptr.vmem [resolvable:$true] %s299
          %302 = dma.vmem_to_hbm [thread:$0]  %s300, 128, %s297, %s285
        $region44: #{tpu_custom_call.1} parent=39 // pred_fallthru
          _
      $region40: #{tpu_custom_call.1} parent=5 // pred_fallthru
        _
      %p303 = scmp.le.s32.totalorder 2, %s14
      // Predicated region
      $region45: #{tpu_custom_call.1} parent=5 // pred_check
        %p304 = pneg %p303
      $region46: #{tpu_custom_call.1} parent=5 // pred_check_branch
        %306 = sbr.rel (%p304) target = $region48
      $region47: #{tpu_custom_call.1} parent=5 // pred_region
        %s307 = ssub.s32 %s14, 2
        // Predicated region
        $region49: #{tpu_custom_call.1} parent=47 // pred_check
          %p308 = pneg %p153
        $region50: #{tpu_custom_call.1} parent=47 // pred_check_branch
          %310 = sbr.rel (%p308) target = $region52
        $region51: #{tpu_custom_call.1} parent=47 // pred_region
          %s311 = sand.u32 %s138, 1
          %s312 = scalar_lea.sflag [#allocation3], %s311
          %s313 = sand.u32 %s138, 1
          %s314 = smul.addr %s313, 8
          %s315 = scalar_lea.vmem [#allocation2], %s314
          %316 = dma.done %s312, 128
        $region52: #{tpu_custom_call.1} parent=47 // pred_fallthru
          _
      $region48: #{tpu_custom_call.1} parent=5 // pred_fallthru
        _
    $region6: #{tpu_custom_call.1} parent=1 // loop_footer
      %s18 = sadd.s32 1, %s14
    $region7: #{tpu_custom_call.1} parent=1 // loop_footer_branch
      %13 = sbr.rel target = $region3
    $region8: #{tpu_custom_call.1} parent=1 // loop_exit
      _
    %317 = vsyncpa [#allocation3], 1
    %s318 = scalar_lea.sflag [#allocation3], 1
    %319 = vsyncpa %s318, 1

</llo_original>
